<compile_context>
chip_gen: v7x
topology: tpu7x:2x2x1
jax: 0.10.0
libtpu: 0.0.40
codegen_flags: <defaults>
</compile_context>

<pallas_src>
import jax
import jax.numpy as jnp
from jax.experimental import pallas as pl
from jax.experimental.pallas import tpu as pltpu


def simplenet_kernel(xt_ref, w1_ref, b1_ref, w2_ref, b2_ref, ot_ref):
    xt = xt_ref[...]          # [Fin, TB]  (features on sublanes, batch on lanes)
    w1 = w1_ref[...]          # [Fh, Fin]  PyTorch [out, in] layout
    w2 = w2_ref[...]          # [Fo, Fh]
    b1 = b1_ref[...]          # [Fh, 1]
    b2 = b2_ref[...]          # [Fo, 1]

    fin, tb = xt.shape
    fh = w1.shape[0]
    fo = w2.shape[0]

    # Layer 1: h = sigmoid(W1 @ x + b1) as unrolled VPU broadcast-FMA (no MXU).
    acc1 = jnp.broadcast_to(b1, (fh, tb))
    for k in range(fin):
        acc1 = acc1 + w1[:, k:k + 1] * xt[k:k + 1, :]
    h = jax.nn.sigmoid(acc1)

    # Layer 2: y = sigmoid(W2 @ h + b2), same unrolled broadcast-FMA.
    acc2 = jnp.broadcast_to(b2, (fo, tb))
    for j in range(fh):
        acc2 = acc2 + w2[:, j:j + 1] * h[j:j + 1, :]
    ot_ref[...] = jax.nn.sigmoid(acc2).astype(ot_ref.dtype)


def simplenet_forward(x, w1, b1, w2, b2, *, tb=None):
    """x: [B, Fin]; w1: [Fh, Fin]; b1: [Fh]; w2: [Fo, Fh]; b2: [Fo]."""
    B, fin = x.shape
    fh = w1.shape[0]
    fo = w2.shape[0]          # output width derived from fc2, not from x

    if tb is None:
        # Lane-dense batch tile: multiple of 128, big enough to amortize the
        # ~0.35us per-grid-step overhead, small enough to never pressure VMEM
        # (a 1024-wide f32 tile of 4 rows is only 16 KiB).
        tb = max(128, min(1024, pl.cdiv(B, 128) * 128))
    assert tb % 128 == 0, "batch tile must be a multiple of 128 lanes"
    b_pad = pl.cdiv(B, tb) * tb

    # Transpose + zero-pad batch in the wrapper (layout plumbing, not compute).
    xt = jnp.zeros((fin, b_pad), jnp.float32).at[:, :B].set(x.T.astype(jnp.float32))
    b1c = b1.reshape(fh, 1).astype(jnp.float32)
    b2c = b2.reshape(fo, 1).astype(jnp.float32)

    out_t = pl.pallas_call(
        simplenet_kernel,
        out_shape=jax.ShapeDtypeStruct((fo, b_pad), jnp.float32),
        grid=(b_pad // tb,),
        in_specs=[
            pl.BlockSpec((fin, tb), lambda i: (0, i)),   # streamed activation tile
            pl.BlockSpec((fh, fin), lambda i: (0, 0)),   # resident weights/biases
            pl.BlockSpec((fh, 1), lambda i: (0, 0)),
            pl.BlockSpec((fo, fh), lambda i: (0, 0)),
            pl.BlockSpec((fo, 1), lambda i: (0, 0)),
        ],
        out_specs=pl.BlockSpec((fo, tb), lambda i: (0, i)),
        compiler_params=pltpu.CompilerParams(
            dimension_semantics=("parallel",),
        ),
    )(xt, w1.astype(jnp.float32), b1c, w2.astype(jnp.float32), b2c)

    return out_t[:, :B].T     # back to [B, Fo]


def _reference(x, w1, b1, w2, b2):
    h = jax.nn.sigmoid(x @ w1.T + b1)
    return jax.nn.sigmoid(h @ w2.T + b2)


if __name__ == "__main__":
    key = jax.random.PRNGKey(0)
    k1, k2, k3, k4, k5 = jax.random.split(key, 5)

    # Deterministic init mimicking PyTorch nn.Linear default:
    # U(-1/sqrt(fan_in), 1/sqrt(fan_in)), W stored as [out, in].
    bound = 1.0 / jnp.sqrt(4.0)
    w1 = jax.random.uniform(k1, (4, 4), jnp.float32, -bound, bound)
    b1 = jax.random.uniform(k2, (4,), jnp.float32, -bound, bound)
    w2 = jax.random.uniform(k3, (4, 4), jnp.float32, -bound, bound)
    b2 = jax.random.uniform(k4, (4,), jnp.float32, -bound, bound)

    # Same input as the PyTorch script: x = [[1, 2, 3, 4]], float32.
    x = jnp.array([[1.0, 2.0, 3.0, 4.0]], dtype=jnp.float32)
    out = jax.block_until_ready(simplenet_forward(x, w1, b1, w2, b2))
    ref = _reference(x, w1, b1, w2, b2)
    assert out.shape == (1, 4)
    assert jnp.allclose(out, ref, atol=1e-5), (out, ref)

    # Small batched case with a forced 128-wide tile to exercise the multi-step
    # grid path (grid = (3,)) and the padding/slicing logic.
    xb = jax.random.normal(k5, (300, 4), jnp.float32)
    outb = jax.block_until_ready(simplenet_forward(xb, w1, b1, w2, b2, tb=128))
    refb = _reference(xb, w1, b1, w2, b2)
    assert outb.shape == (300, 4)
    assert jnp.allclose(outb, refb, atol=1e-5)

    print("KERNEL_OK")
</pallas_src>

<mosaic_0001>
module attributes {stable_mosaic.version = 11 : i64} {
  func.func @simplenet_kernel(%arg0: i32, %arg1: memref<4x128xf32, #tpu.memory_space<vmem>>, %arg2: memref<4x4xf32, #tpu.memory_space<vmem>>, %arg3: memref<4x1xf32, #tpu.memory_space<vmem>>, %arg4: memref<4x4xf32, #tpu.memory_space<vmem>>, %arg5: memref<4x1xf32, #tpu.memory_space<vmem>>, %arg6: memref<4x128xf32, #tpu.memory_space<vmem>>) attributes {dimension_semantics = [#tpu.dimension_semantics<parallel>], iteration_bounds = array<i64: 1>, scalar_prefetch = 0 : i64, scratch_operands = 0 : i64, tpu.core_type = #tpu.core_type<tc>, window_params = [{transform_indices = @transform_0, window_bounds = array<i64: 4, 128>}, {pipeline_mode = #tpu.pipeline_mode<synchronous>, transform_indices = @transform_1, window_bounds = array<i64: 4, 4>}, {pipeline_mode = #tpu.pipeline_mode<synchronous>, transform_indices = @transform_2, window_bounds = array<i64: 4, 1>}, {pipeline_mode = #tpu.pipeline_mode<synchronous>, transform_indices = @transform_3, window_bounds = array<i64: 4, 4>}, {pipeline_mode = #tpu.pipeline_mode<synchronous>, transform_indices = @transform_4, window_bounds = array<i64: 4, 1>}, {transform_indices = @transform_5, window_bounds = array<i64: 4, 128>}]} {
    %c0 = arith.constant 0 : index
    %c0_0 = arith.constant 0 : index
    %0 = vector.load %arg1[%c0, %c0_0] : memref<4x128xf32, #tpu.memory_space<vmem>>, vector<4x128xf32>
    %c0_1 = arith.constant 0 : index
    %c0_2 = arith.constant 0 : index
    %1 = vector.load %arg2[%c0_1, %c0_2] : memref<4x4xf32, #tpu.memory_space<vmem>>, vector<4x4xf32>
    %c0_3 = arith.constant 0 : index
    %c0_4 = arith.constant 0 : index
    %2 = vector.load %arg4[%c0_3, %c0_4] : memref<4x4xf32, #tpu.memory_space<vmem>>, vector<4x4xf32>
    %c0_5 = arith.constant 0 : index
    %c0_6 = arith.constant 0 : index
    %3 = vector.load %arg3[%c0_5, %c0_6] : memref<4x1xf32, #tpu.memory_space<vmem>>, vector<4x1xf32>
    %c0_7 = arith.constant 0 : index
    %c0_8 = arith.constant 0 : index
    %4 = vector.load %arg5[%c0_7, %c0_8] : memref<4x1xf32, #tpu.memory_space<vmem>>, vector<4x1xf32>
    %5 = vector.shape_cast %3 : vector<4x1xf32> to vector<4x1xf32>
    %6 = vector.broadcast %5 : vector<4x1xf32> to vector<4x128xf32>
    %7 = vector.extract_strided_slice %1 {offsets = [0, 0], sizes = [4, 1], strides = [1, 1]} : vector<4x4xf32> to vector<4x1xf32>
    %8 = vector.extract_strided_slice %0 {offsets = [0, 0], sizes = [1, 128], strides = [1, 1]} : vector<4x128xf32> to vector<1x128xf32>
    %9 = vector.broadcast %7 : vector<4x1xf32> to vector<4x128xf32>
    %10 = vector.broadcast %8 : vector<1x128xf32> to vector<4x128xf32>
    %11 = arith.mulf %9, %10 : vector<4x128xf32>
    %12 = arith.addf %6, %11 : vector<4x128xf32>
    %13 = vector.extract_strided_slice %1 {offsets = [0, 1], sizes = [4, 1], strides = [1, 1]} : vector<4x4xf32> to vector<4x1xf32>
    %14 = vector.extract_strided_slice %0 {offsets = [1, 0], sizes = [1, 128], strides = [1, 1]} : vector<4x128xf32> to vector<1x128xf32>
    %15 = vector.broadcast %13 : vector<4x1xf32> to vector<4x128xf32>
    %16 = vector.broadcast %14 : vector<1x128xf32> to vector<4x128xf32>
    %17 = arith.mulf %15, %16 : vector<4x128xf32>
    %18 = arith.addf %12, %17 : vector<4x128xf32>
    %19 = vector.extract_strided_slice %1 {offsets = [0, 2], sizes = [4, 1], strides = [1, 1]} : vector<4x4xf32> to vector<4x1xf32>
    %20 = vector.extract_strided_slice %0 {offsets = [2, 0], sizes = [1, 128], strides = [1, 1]} : vector<4x128xf32> to vector<1x128xf32>
    %21 = vector.broadcast %19 : vector<4x1xf32> to vector<4x128xf32>
    %22 = vector.broadcast %20 : vector<1x128xf32> to vector<4x128xf32>
    %23 = arith.mulf %21, %22 : vector<4x128xf32>
    %24 = arith.addf %18, %23 : vector<4x128xf32>
    %25 = vector.extract_strided_slice %1 {offsets = [0, 3], sizes = [4, 1], strides = [1, 1]} : vector<4x4xf32> to vector<4x1xf32>
    %26 = vector.extract_strided_slice %0 {offsets = [3, 0], sizes = [1, 128], strides = [1, 1]} : vector<4x128xf32> to vector<1x128xf32>
    %27 = vector.broadcast %25 : vector<4x1xf32> to vector<4x128xf32>
    %28 = vector.broadcast %26 : vector<1x128xf32> to vector<4x128xf32>
    %29 = arith.mulf %27, %28 : vector<4x128xf32>
    %30 = arith.addf %24, %29 : vector<4x128xf32>
    %31 = arith.negf %30 : vector<4x128xf32>
    %32 = math.exp %31 : vector<4x128xf32>
    %cst = arith.constant 1.000000e+00 : f32
    %33 = vector.broadcast %cst : f32 to vector<4x128xf32>
    %34 = arith.addf %33, %32 : vector<4x128xf32>
    %35 = arith.divf %33, %34 : vector<4x128xf32>
    %36 = vector.shape_cast %4 : vector<4x1xf32> to vector<4x1xf32>
    %37 = vector.broadcast %36 : vector<4x1xf32> to vector<4x128xf32>
    %38 = vector.extract_strided_slice %2 {offsets = [0, 0], sizes = [4, 1], strides = [1, 1]} : vector<4x4xf32> to vector<4x1xf32>
    %39 = vector.extract_strided_slice %35 {offsets = [0, 0], sizes = [1, 128], strides = [1, 1]} : vector<4x128xf32> to vector<1x128xf32>
    %40 = vector.broadcast %38 : vector<4x1xf32> to vector<4x128xf32>
    %41 = vector.broadcast %39 : vector<1x128xf32> to vector<4x128xf32>
    %42 = arith.mulf %40, %41 : vector<4x128xf32>
    %43 = arith.addf %37, %42 : vector<4x128xf32>
    %44 = vector.extract_strided_slice %2 {offsets = [0, 1], sizes = [4, 1], strides = [1, 1]} : vector<4x4xf32> to vector<4x1xf32>
    %45 = vector.extract_strided_slice %35 {offsets = [1, 0], sizes = [1, 128], strides = [1, 1]} : vector<4x128xf32> to vector<1x128xf32>
    %46 = vector.broadcast %44 : vector<4x1xf32> to vector<4x128xf32>
    %47 = vector.broadcast %45 : vector<1x128xf32> to vector<4x128xf32>
    %48 = arith.mulf %46, %47 : vector<4x128xf32>
    %49 = arith.addf %43, %48 : vector<4x128xf32>
    %50 = vector.extract_strided_slice %2 {offsets = [0, 2], sizes = [4, 1], strides = [1, 1]} : vector<4x4xf32> to vector<4x1xf32>
    %51 = vector.extract_strided_slice %35 {offsets = [2, 0], sizes = [1, 128], strides = [1, 1]} : vector<4x128xf32> to vector<1x128xf32>
    %52 = vector.broadcast %50 : vector<4x1xf32> to vector<4x128xf32>
    %53 = vector.broadcast %51 : vector<1x128xf32> to vector<4x128xf32>
    %54 = arith.mulf %52, %53 : vector<4x128xf32>
    %55 = arith.addf %49, %54 : vector<4x128xf32>
    %56 = vector.extract_strided_slice %2 {offsets = [0, 3], sizes = [4, 1], strides = [1, 1]} : vector<4x4xf32> to vector<4x1xf32>
    %57 = vector.extract_strided_slice %35 {offsets = [3, 0], sizes = [1, 128], strides = [1, 1]} : vector<4x128xf32> to vector<1x128xf32>
    %58 = vector.broadcast %56 : vector<4x1xf32> to vector<4x128xf32>
    %59 = vector.broadcast %57 : vector<1x128xf32> to vector<4x128xf32>
    %60 = arith.mulf %58, %59 : vector<4x128xf32>
    %61 = arith.addf %55, %60 : vector<4x128xf32>
    %62 = arith.negf %61 : vector<4x128xf32>
    %63 = math.exp %62 : vector<4x128xf32>
    %cst_9 = arith.constant 1.000000e+00 : f32
    %64 = vector.broadcast %cst_9 : f32 to vector<4x128xf32>
    %65 = arith.addf %64, %63 : vector<4x128xf32>
    %66 = arith.divf %64, %65 : vector<4x128xf32>
    %c0_10 = arith.constant 0 : index
    %c0_11 = arith.constant 0 : index
    %67 = vector.load %arg6[%c0_10, %c0_11] : memref<4x128xf32, #tpu.memory_space<vmem>>, vector<4x128xf32>
    tpu.vector_store %arg6[%c0_10, %c0_11], %66 {strides = array<i32>} : memref<4x128xf32, #tpu.memory_space<vmem>>, vector<4x128xf32>,
    return
  }
  func.func @transform_0(%arg0: i32) -> (i32, i32) {
    %c0_i32 = arith.constant 0 : i32
    %c0_i32_0 = arith.constant 0 : i32
    return %c0_i32, %arg0 : i32, i32
  }
  func.func @transform_1(%arg0: i32) -> (i32, i32) {
    %c0_i32 = arith.constant 0 : i32
    %c0_i32_0 = arith.constant 0 : i32
    %c0_i32_1 = arith.constant 0 : i32
    return %c0_i32, %c0_i32_0 : i32, i32
  }
  func.func @transform_2(%arg0: i32) -> (i32, i32) {
    %c0_i32 = arith.constant 0 : i32
    %c0_i32_0 = arith.constant 0 : i32
    %c0_i32_1 = arith.constant 0 : i32
    return %c0_i32, %c0_i32_0 : i32, i32
  }
  func.func @transform_3(%arg0: i32) -> (i32, i32) {
    %c0_i32 = arith.constant 0 : i32
    %c0_i32_0 = arith.constant 0 : i32
    %c0_i32_1 = arith.constant 0 : i32
    return %c0_i32, %c0_i32_0 : i32, i32
  }
  func.func @transform_4(%arg0: i32) -> (i32, i32) {
    %c0_i32 = arith.constant 0 : i32
    %c0_i32_0 = arith.constant 0 : i32
    %c0_i32_1 = arith.constant 0 : i32
    return %c0_i32, %c0_i32_0 : i32, i32
  }
  func.func @transform_5(%arg0: i32) -> (i32, i32) {
    %c0_i32 = arith.constant 0 : i32
    %c0_i32_0 = arith.constant 0 : i32
    return %c0_i32, %arg0 : i32, i32
  }
}

</mosaic_0001>

<llo_original>
// kernel: tpu_custom_call.1
$region0: #{tpu_custom_call.1}
  #allocation0 [shape = 'u32[]', space=smem, size = 0x4, offset = 0x4, fixed_abs, tag = 'smem constant byte address 0x4 - core index']
  #allocation1 [shape = 'u32[144,128]{1,0:T(1,128)}', space=vmem, size = 0x12000, scoped, tag = 'internal scratch']
  %s0 = inlined_call_operand.vmem [shape: f32[4,128], index: 0, kind: input, shape index: {}]
  %s1 = inlined_call_operand.vmem [shape: f32[4,4], index: 1, kind: input, shape index: {}]
  %s2 = inlined_call_operand.vmem [shape: f32[4,1], index: 2, kind: input, shape index: {}]
  %s3 = inlined_call_operand.vmem [shape: f32[4,4], index: 3, kind: input, shape index: {}]
  %s4 = inlined_call_operand.vmem [shape: f32[4,1], index: 4, kind: input, shape index: {}]
  %s5 = inlined_call_operand.hbm [shape: f32[4,128], index: 5, kind: output, shape index: {}]
  %s6 = sld [smem:[#allocation0]]
  $region30: #{tpu_custom_call.1} parent=0
    _
  %s8 = ssub.s32 1, %s6
  %s9 = scalar_select 0, %s8, %s6
  $region1: #{tpu_custom_call.1} parent=0
    #allocation2 [shape = 'u8[2048]{0}', space=vmem, size = 0x800, scoped, tag = 'output window, operand 0, single buffered']
    #allocation3 [shape = 's32[1]{0}', space=sflag, size = 0x4, scoped, tag = 'scoped memory for tpu_custom_call.1']
    %10 = vsyncpa [#allocation3], 0
    // Predicated region
    $region2: #{tpu_custom_call.1} parent=1 // pred_check
      _
    $region3: #{tpu_custom_call.1} parent=1 // pred_check_branch
      %12 = sbr.rel (0) target = $region5
    $region4: #{tpu_custom_call.1} parent=1 // pred_region
      _
    $region5: #{tpu_custom_call.1} parent=1 // pred_fallthru
      _
    // Predicated region
    $region6: #{tpu_custom_call.1} parent=1 // pred_check
      _
    $region7: #{tpu_custom_call.1} parent=1 // pred_check_branch
      %14 = sbr.rel (0) target = $region9
    $region8: #{tpu_custom_call.1} parent=1 // pred_region
      _
    $region9: #{tpu_custom_call.1} parent=1 // pred_fallthru
      _
    // Predicated region
    $region10: #{tpu_custom_call.1} parent=1 // pred_check
      _
    $region11: #{tpu_custom_call.1} parent=1 // pred_check_branch
      %16 = sbr.rel (0) target = $region13
    $region12: #{tpu_custom_call.1} parent=1 // pred_region
      _
    $region13: #{tpu_custom_call.1} parent=1 // pred_fallthru
      _
    // Predicated region
    $region14: #{tpu_custom_call.1} parent=1 // pred_check
      _
    $region15: #{tpu_custom_call.1} parent=1 // pred_check_branch
      %18 = sbr.rel (0) target = $region17
    $region16: #{tpu_custom_call.1} parent=1 // pred_region
      _
    $region17: #{tpu_custom_call.1} parent=1 // pred_fallthru
      _
    // Predicated region
    $region18: #{tpu_custom_call.1} parent=1 // pred_check
      _
    $region19: #{tpu_custom_call.1} parent=1 // pred_check_branch
      %20 = sbr.rel (0) target = $region21
    $region20: #{tpu_custom_call.1} parent=1 // pred_region
      _
    $region21: #{tpu_custom_call.1} parent=1 // pred_fallthru
      _
    %v21 = vld [vmem:[%s0] sm:$0xf]
    %v22 = vld [vmem:[%s1] sm:$0xf]
    %v23 = vld [vmem:[%s3] sm:$0xf]
    %v24 = vld [vmem:[%s2] sm:$0xf]
    %v25 = vld [vmem:[%s4] sm:$0xf]
    %27 = vset.pattern.permute.xlu0 0
    %28 = vperm.xlu0 %27, %v24
    %v29 = vpop.permute.xlu0 %28
    %32 = vset.pattern.permute.xlu0 0
    %33 = vperm.xlu0 %32, %v22
    %v34 = vpop.permute.xlu0 %33
    %v36 = vlaneseq
    %v37 = vshrl.u32 %v36, 7
    %v38 = vsub.s32 0, %v37
    %v39 = vrot.slane %v21, %v38
    %v40 = vmul.f32 %v34, %v39
    %v41 = vadd.f32 %v29, %v40
    %42 = vset.pattern.permute.xlu0 1
    %43 = vperm.xlu0 %42, %v22
    %v44 = vpop.permute.xlu0 %43
    %v46 = vlaneseq
    %v47 = vshrl.u32 %v46, 7
    %v48 = vsub.s32 1, %v47
    %v49 = vrot.slane %v21, %v48
    %v50 = vmul.f32 %v44, %v49
    %v51 = vadd.f32 %v41, %v50
    %52 = vset.pattern.permute.xlu0 2
    %53 = vperm.xlu0 %52, %v22
    %v54 = vpop.permute.xlu0 %53
    %v56 = vlaneseq
    %v57 = vshrl.u32 %v56, 7
    %v58 = vsub.s32 2, %v57
    %v59 = vrot.slane %v21, %v58
    %v60 = vmul.f32 %v54, %v59
    %v61 = vadd.f32 %v51, %v60
    %62 = vset.pattern.permute.xlu0 3
    %63 = vperm.xlu0 %62, %v22
    %v64 = vpop.permute.xlu0 %63
    %v66 = vlaneseq
    %v67 = vshrl.u32 %v66, 7
    %v68 = vsub.s32 3, %v67
    %v69 = vrot.slane %v21, %v68
    %v70 = vmul.f32 %v64, %v69
    %v71 = vadd.f32 %v61, %v70
    %v72 = vxor.u32 %v71, 2147483648
    %v73 = vmul.f32 %v72, 1.442695
    %v74 = vpow.pop %v73
    %v75 = vadd.f32 %v74, 1.0
    %v76 = vrcp.pop %v75
    %v77 = vmul.f32 1.0, %v76
    %79 = vset.pattern.permute.xlu0 0
    %80 = vperm.xlu0 %79, %v25
    %v81 = vpop.permute.xlu0 %80
    %84 = vset.pattern.permute.xlu0 0
    %85 = vperm.xlu0 %84, %v23
    %v86 = vpop.permute.xlu0 %85
    %v88 = vlaneseq
    %v89 = vshrl.u32 %v88, 7
    %v90 = vsub.s32 0, %v89
    %v91 = vrot.slane %v77, %v90
    %v92 = vmul.f32 %v86, %v91
    %v93 = vadd.f32 %v81, %v92
    %94 = vset.pattern.permute.xlu0 1
    %95 = vperm.xlu0 %94, %v23
    %v96 = vpop.permute.xlu0 %95
    %v98 = vlaneseq
    %v99 = vshrl.u32 %v98, 7
    %v100 = vsub.s32 1, %v99
    %v101 = vrot.slane %v77, %v100
    %v102 = vmul.f32 %v96, %v101
    %v103 = vadd.f32 %v93, %v102
    %104 = vset.pattern.permute.xlu0 2
    %105 = vperm.xlu0 %104, %v23
    %v106 = vpop.permute.xlu0 %105
    %v108 = vlaneseq
    %v109 = vshrl.u32 %v108, 7
    %v110 = vsub.s32 2, %v109
    %v111 = vrot.slane %v77, %v110
    %v112 = vmul.f32 %v106, %v111
    %v113 = vadd.f32 %v103, %v112
    %114 = vset.pattern.permute.xlu0 3
    %115 = vperm.xlu0 %114, %v23
    %v116 = vpop.permute.xlu0 %115
    %v118 = vlaneseq
    %v119 = vshrl.u32 %v118, 7
    %v120 = vsub.s32 3, %v119
    %v121 = vrot.slane %v77, %v120
    %v122 = vmul.f32 %v116, %v121
    %v123 = vadd.f32 %v113, %v122
    %v124 = vxor.u32 %v123, 2147483648
    %v125 = vmul.f32 %v124, 1.442695
    %v126 = vpow.pop %v125
    %v127 = vadd.f32 %v126, 1.0
    %v128 = vrcp.pop %v127
    %v129 = vmul.f32 1.0, %v128
    %130 = vst [vmem:[#allocation2] sm:$0xf] %v129
    // Predicated region
    $region22: #{tpu_custom_call.1} parent=1 // pred_check
      _
    $region23: #{tpu_custom_call.1} parent=1 // pred_check_branch
      %132 = sbr.rel (0) target = $region25
    $region24: #{tpu_custom_call.1} parent=1 // pred_region
      %s134 = ssub.s32 64, 64
      %135 = vsyncadd [#allocation3], %s134
      %s137 = sshll.u32 [#allocation2], 4
      %s138 = int_to_ptr.vmem [resolvable:$true] %s137
      %140 = dma.vmem_to_hbm [thread:$0]  %s138, 64, %s5, [#allocation3]
    $region25: #{tpu_custom_call.1} parent=1 // pred_fallthru
      _
    // Predicated region
    $region26: #{tpu_custom_call.1} parent=1 // pred_check
      _
    $region27: #{tpu_custom_call.1} parent=1 // pred_check_branch
      %142 = sbr.rel (0) target = $region29
    $region28: #{tpu_custom_call.1} parent=1 // pred_region
      %143 = dma.done [#allocation3], 64
    $region29: #{tpu_custom_call.1} parent=1 // pred_fallthru
      _
    %144 = vsyncpa [#allocation3], 1

</llo_original>
